<compile_context>
chip_gen: v7x
topology: tpu7x:2x2x1
jax: 0.10.0
libtpu: 0.0.40
codegen_flags: <defaults>
</compile_context>

<pallas_src>
import functools

import jax
import jax.numpy as jnp
import numpy as np
from jax.experimental import pallas as pl
from jax.experimental.pallas import tpu as pltpu


def _ensemble_kernel(x_ref, w_ref, b_ref, o_ref, acc_ref, *, n_ens, cpad):
    """One (batch-tile, K-tile) grid step.

    x_ref  : (tb, tk)      f32  (cast to bf16 in-kernel)
    w_ref  : (tk, E*Cpad)  bf16 (pre-scaled by 1/E offline)
    b_ref  : (1, Cpad)     f32  (pre-reduced ensemble-mean bias)
    o_ref  : (tb, Cpad)    f32
    acc_ref: (tb, E*Cpad)  f32 VMEM accumulator, resident across the K axis
    """
    k = pl.program_id(1)

    @pl.when(k == 0)
    def _():
        acc_ref[...] = jnp.zeros_like(acc_ref)

    # Natural (M,K)x(K,N) MXU feed; f32 accumulation.
    acc_ref[...] += jax.lax.dot_general(
        x_ref[...].astype(jnp.bfloat16),
        w_ref[...],
        dimension_numbers=(((1,), (0,)), ((), ())),
        preferred_element_type=jnp.float32,
    )

    @pl.when(k == pl.num_programs(1) - 1)
    def _():
        logits = acc_ref[...]                       # (tb, E*Cpad) f32
        # Ensemble mean = plain sum (1/E already folded into the weights).
        # E is small & static -> unrolled lane-aligned VPU adds.
        red = logits[:, 0:cpad]
        for e in range(1, n_ens):
            red = red + logits[:, e * cpad:(e + 1) * cpad]
        o_ref[...] = (red + b_ref[...]).astype(o_ref.dtype)


@functools.partial(jax.jit, static_argnames=("num_classes",))
def ensemble_forward(x, W_t, b_mean, *, num_classes):
    """x: (B, C, H, W) f32; W_t: (F, E*Cpad) bf16 packed/scaled weights;
    b_mean: (1, Cpad) f32 pre-reduced ensemble-mean bias."""
    B = x.shape[0]
    F_dim = int(np.prod(x.shape[1:]))
    _, Cp = b_mean.shape
    F_w, N = W_t.shape
    assert F_w == F_dim and N % Cp == 0
    E = N // Cp

    xf = x.reshape(B, F_dim)  # stays f32; bf16 cast happens inside the kernel

    # Batch tile: 128-first (matches v5e MXU M-width; fine on v6e/v7x), else B.
    tb = B
    for cand in (128, 64, 32, 16, 8):
        if B % cand == 0:
            tb = cand
            break

    # K (feature) tile: keeps the weight block small and the DMA pipelined.
    tk = F_dim
    for cand in (512, 256, 128):
        if F_dim % cand == 0:
            tk = cand
            break

    grid = (B // tb, F_dim // tk)

    cost = pl.CostEstimate(
        flops=2 * B * F_dim * N,
        transcendentals=0,
        bytes_accessed=B * F_dim * 4 + F_dim * N * 2 + Cp * 4 + B * Cp * 4,
    )

    out = pl.pallas_call(
        functools.partial(_ensemble_kernel, n_ens=E, cpad=Cp),
        out_shape=jax.ShapeDtypeStruct((B, Cp), jnp.float32),
        grid_spec=pltpu.PrefetchScalarGridSpec(
            num_scalar_prefetch=0,
            grid=grid,
            in_specs=[
                pl.BlockSpec((tb, tk), lambda i, k: (i, k)),   # x batch/K tile
                pl.BlockSpec((tk, N), lambda i, k: (k, 0)),    # weight K tile
                pl.BlockSpec((1, Cp), lambda i, k: (0, 0)),    # tiny resident bias
            ],
            out_specs=pl.BlockSpec((tb, Cp), lambda i, k: (i, 0)),  # resident over K
            scratch_shapes=[pltpu.VMEM((tb, N), jnp.float32)],      # f32 accumulator
        ),
        compiler_params=pltpu.CompilerParams(
            dimension_semantics=("parallel", "arbitrary"),  # batch || , K reduce
            vmem_limit_bytes=32 * 1024 * 1024,
        ),
        cost_estimate=cost,
    )(xf, W_t, b_mean)

    return out[:, :num_classes]


def _make_params(key, ensemble_size, num_classes, feat_dim, cpad):
    """Deterministic synthetic ensemble parameters, packed for the kernel.

    The 1/E mean scale is folded into the weights in f32 BEFORE the single
    offline bf16 cast; the bias is pre-reduced to its ensemble mean.
    """
    kw, kb = jax.random.split(key)
    W = jax.random.normal(kw, (ensemble_size, num_classes, feat_dim),
                          dtype=jnp.float32) * (1.0 / np.sqrt(feat_dim))
    b = jax.random.normal(kb, (ensemble_size, num_classes),
                          dtype=jnp.float32) * 0.01

    W_scaled = W * (1.0 / ensemble_size)
    W_pad = jnp.zeros((ensemble_size, cpad, feat_dim), jnp.float32)
    W_pad = W_pad.at[:, :num_classes].set(W_scaled)
    # Pack to (F, E*Cpad): column e*Cpad + c holds W[e, c, :] / E.  Stored bf16.
    W_t = jnp.transpose(W_pad, (2, 0, 1)).reshape(
        feat_dim, ensemble_size * cpad).astype(jnp.bfloat16)

    b_pad = jnp.zeros((ensemble_size, cpad), jnp.float32).at[:, :num_classes].set(b)
    b_mean = jnp.mean(b_pad, axis=0, keepdims=True)  # (1, Cpad) f32
    return W, b, W_t, b_mean


if __name__ == "__main__":
    # Small, module-consistent shapes.
    B, C, H, Wd = 2, 4, 16, 16
    ensemble_size = 3
    num_classes = 10
    feat_dim = C * H * Wd                      # 1024
    cpad = 128                                 # num_classes padded to lane width

    key = jax.random.PRNGKey(0)
    kx, kp = jax.random.split(key)
    x = jax.random.normal(kx, (B, C, H, Wd), dtype=jnp.float32)

    W, b, W_t, b_mean = _make_params(kp, ensemble_size, num_classes, feat_dim, cpad)
    # One-time offline pack/scale/cast (persistent bf16 storage, not per-call).
    W_t = jax.block_until_ready(W_t)
    b_mean = jax.block_until_ready(b_mean)

    # TODO(synk): the spec's ensemble members are arbitrary nn.Modules; only a
    # Linear backbone stand-in is expressed here (the wrapper itself is
    # backbone-agnostic and .cuda() placement has no Pallas equivalent).
    out = ensemble_forward(x, W_t, b_mean, num_classes=num_classes)
    out = jax.block_until_ready(out)

    # Pure-JAX f32 reference of the PyTorch forward (stack over ensemble, mean(0)).
    xf = x.reshape(B, feat_dim)
    ref = jnp.stack(
        [xf @ W[e].T + b[e] for e in range(ensemble_size)]
    ).mean(0)

    # bf16 matmul operands inside the kernel -> relaxed tolerance vs f32 reference.
    np.testing.assert_allclose(np.asarray(out), np.asarray(ref), rtol=5e-2, atol=5e-2)
    print("KERNEL_OK")
</pallas_src>

<mosaic_0001>
module attributes {stable_mosaic.version = 11 : i64} {
  func.func @_ensemble_kernel(%arg0: i32, %arg1: i32, %arg2: memref<2x512xf32, #tpu.memory_space<vmem>>, %arg3: memref<512x384xbf16, #tpu.memory_space<vmem>>, %arg4: memref<1x128xf32, #tpu.memory_space<vmem>>, %arg5: memref<2x128xf32, #tpu.memory_space<vmem>>, %arg6: memref<2x384xf32, #tpu.memory_space<vmem>>) attributes {dimension_semantics = [#tpu.dimension_semantics<parallel>, #tpu.dimension_semantics<arbitrary>], iteration_bounds = array<i64: 1, 2>, scalar_prefetch = 0 : i64, scratch_operands = 1 : i64, tpu.core_type = #tpu.core_type<tc>, window_params = [{transform_indices = @transform_0, window_bounds = array<i64: 2, 512>}, {transform_indices = @transform_1, window_bounds = array<i64: 512, 384>}, {pipeline_mode = #tpu.pipeline_mode<synchronous>, transform_indices = @transform_2, window_bounds = array<i64: 1, 128>}, {transform_indices = @transform_3, window_bounds = array<i64: 2, 128>}]} {
    %c0_i32 = arith.constant 0 : i32
    %0 = arith.cmpi eq, %arg1, %c0_i32 : i32
    %1 = arith.extui %0 : i1 to i32
    %c0_i32_0 = arith.constant 0 : i32
    %2 = arith.cmpi ne, %1, %c0_i32_0 : i32
    scf.if %2 {
      %cst_9 = arith.constant 0.000000e+00 : f32
      %13 = vector.broadcast %cst_9 : f32 to vector<2x384xf32>
      %c0_10 = arith.constant 0 : index
      %c0_11 = arith.constant 0 : index
      %14 = vector.load %arg6[%c0_10, %c0_11] : memref<2x384xf32, #tpu.memory_space<vmem>>, vector<2x384xf32>
      tpu.vector_store %arg6[%c0_10, %c0_11], %13 {strides = array<i32>} : memref<2x384xf32, #tpu.memory_space<vmem>>, vector<2x384xf32>,
    } else {
    }
    %c0 = arith.constant 0 : index
    %c0_1 = arith.constant 0 : index
    %3 = vector.load %arg6[%c0, %c0_1] : memref<2x384xf32, #tpu.memory_space<vmem>>, vector<2x384xf32>
    %c0_2 = arith.constant 0 : index
    %c0_3 = arith.constant 0 : index
    %4 = vector.load %arg2[%c0_2, %c0_3] : memref<2x512xf32, #tpu.memory_space<vmem>>, vector<2x512xf32>
    %5 = arith.truncf %4 : vector<2x512xf32> to vector<2x512xbf16>
    %c0_4 = arith.constant 0 : index
    %c0_5 = arith.constant 0 : index
    %6 = vector.load %arg3[%c0_4, %c0_5] : memref<512x384xbf16, #tpu.memory_space<vmem>>, vector<512x384xbf16>
    %cst = arith.constant dense<0.000000e+00> : vector<2x384xf32>
    %7 = tpu.matmul %5, %6, %cst {dimension_numbers = #tpu.dot_dimension_numbers<[1], [0], [0], [1], [0, 0, 1, 1], [], []>} : vector<2x512xbf16>, vector<512x384xbf16>, vector<2x384xf32> -> vector<2x384xf32>
    %8 = arith.addf %3, %7 : vector<2x384xf32>
    %c0_6 = arith.constant 0 : index
    %c0_7 = arith.constant 0 : index
    %9 = vector.load %arg6[%c0_6, %c0_7] : memref<2x384xf32, #tpu.memory_space<vmem>>, vector<2x384xf32>
    tpu.vector_store %arg6[%c0_6, %c0_7], %8 {strides = array<i32>} : memref<2x384xf32, #tpu.memory_space<vmem>>, vector<2x384xf32>,
    %c1_i32 = arith.constant 1 : i32
    %10 = arith.cmpi eq, %arg1, %c1_i32 : i32
    %11 = arith.extui %10 : i1 to i32
    %c0_i32_8 = arith.constant 0 : i32
    %12 = arith.cmpi ne, %11, %c0_i32_8 : i32
    scf.if %12 {
      %c0_9 = arith.constant 0 : index
      %c0_10 = arith.constant 0 : index
      %13 = vector.load %arg6[%c0_9, %c0_10] : memref<2x384xf32, #tpu.memory_space<vmem>>, vector<2x384xf32>
      %14 = vector.extract_strided_slice %13 {offsets = [0, 0], sizes = [2, 128], strides = [1, 1]} : vector<2x384xf32> to vector<2x128xf32>
      %15 = vector.extract_strided_slice %13 {offsets = [0, 128], sizes = [2, 128], strides = [1, 1]} : vector<2x384xf32> to vector<2x128xf32>
      %16 = arith.addf %14, %15 : vector<2x128xf32>
      %17 = vector.extract_strided_slice %13 {offsets = [0, 256], sizes = [2, 128], strides = [1, 1]} : vector<2x384xf32> to vector<2x128xf32>
      %18 = arith.addf %16, %17 : vector<2x128xf32>
      %c0_11 = arith.constant 0 : index
      %c0_12 = arith.constant 0 : index
      %19 = vector.load %arg4[%c0_11, %c0_12] : memref<1x128xf32, #tpu.memory_space<vmem>>, vector<1x128xf32>
      %20 = vector.broadcast %19 : vector<1x128xf32> to vector<2x128xf32>
      %21 = arith.addf %18, %20 : vector<2x128xf32>
      %c0_13 = arith.constant 0 : index
      %c0_14 = arith.constant 0 : index
      %22 = vector.load %arg5[%c0_13, %c0_14] : memref<2x128xf32, #tpu.memory_space<vmem>>, vector<2x128xf32>
      tpu.vector_store %arg5[%c0_13, %c0_14], %21 {strides = array<i32>} : memref<2x128xf32, #tpu.memory_space<vmem>>, vector<2x128xf32>,
    } else {
    }
    return
  }
  func.func @transform_0(%arg0: i32, %arg1: i32) -> (i32, i32) {
    %c0_i32 = arith.constant 0 : i32
    return %arg0, %arg1 : i32, i32
  }
  func.func @transform_1(%arg0: i32, %arg1: i32) -> (i32, i32) {
    %c0_i32 = arith.constant 0 : i32
    %c0_i32_0 = arith.constant 0 : i32
    return %arg1, %c0_i32 : i32, i32
  }
  func.func @transform_2(%arg0: i32, %arg1: i32) -> (i32, i32) {
    %c0_i32 = arith.constant 0 : i32
    %c0_i32_0 = arith.constant 0 : i32
    %c0_i32_1 = arith.constant 0 : i32
    return %c0_i32, %c0_i32_0 : i32, i32
  }
  func.func @transform_3(%arg0: i32, %arg1: i32) -> (i32, i32) {
    %c0_i32 = arith.constant 0 : i32
    %c0_i32_0 = arith.constant 0 : i32
    return %arg0, %c0_i32 : i32, i32
  }
}

</mosaic_0001>

<llo_original>
// kernel: ensemble_forward.1
$region0: #{ensemble_forward.1}
  #allocation0 [shape = 'u32[]', space=smem, size = 0x4, offset = 0x4, fixed_abs, tag = 'smem constant byte address 0x4 - core index']
  #allocation1 [shape = 'u32[144,128]{1,0:T(1,128)}', space=vmem, size = 0x12000, scoped, tag = 'internal scratch']
  #allocation2 [shape = 'f32[2,384]{1,0:T(2,128)}', space=vmem, size = 0xc00, scoped, tag = 'scratch operand']
  %s0 = inlined_call_operand.vmem [shape: f32[2,1024], index: 0, kind: input, shape index: {}]
  %s1 = inlined_call_operand.hbm [shape: bf16[1024,384], index: 1, kind: input, shape index: {}]
  %s2 = inlined_call_operand.vmem [shape: f32[1,128], index: 2, kind: input, shape index: {}]
  %s3 = inlined_call_operand.hbm [shape: f32[2,128], index: 3, kind: output, shape index: {}]
  %s4 = sld [smem:[#allocation0]]
  $region57: #{ensemble_forward.1} parent=0
    _
  %s6 = ssub.s32 1, %s4
  %s7 = scalar_select 0, %s6, %s4
  $region1: #{ensemble_forward.1} parent=0
    #allocation3 [shape = 'u8[786432]{0}', space=vmem, size = 0xc0000, scoped, tag = 'input window, operand 1']
    #allocation4 [shape = 's32[2]{0}', space=sflag, size = 0x8, scoped, tag = 'scoped memory for ensemble_forward.1']
    #allocation5 [shape = 's32[2]{0}', space=sflag, size = 0x8, scoped, tag = 'scoped memory for ensemble_forward.1']
    #allocation6 [shape = 'u8[1024]{0}', space=vmem, size = 0x400, scoped, tag = 'output window, operand 0, single buffered']
    %8 = vsyncpa [#allocation4], 0
    %s9 = scalar_lea.sflag [#allocation4], 1
    %10 = vsyncpa %s9, 0
    %11 = vsyncpa [#allocation5], 0
    loop: start=0, step=1, limit=4
    $region2: #{ensemble_forward.1} parent=1 // loop_pre_header
      _
    $region3: #{ensemble_forward.1} parent=1 // loop_header
      %s13 = sphi 0, %s17
      %p14 = scmp.ge.s32.totalorder %s13, 4
      %s20 = sphi 0, %s32
      %s21 = sphi 0, %s28
      %s22 = sphi 0, %s20
      %s23 = sphi 0, %s21
      %s24 = sphi 0, %s22
      %s25 = sphi 0, %s23
      %s37 = sphi 0, %s39
      %s40 = sphi 0, %s37
      %s41 = sphi 0, %s40
      %s57 = sphi 0, %s41
      %s63 = sphi 0, %s65
      %s66 = sphi 0, %s63
      %s67 = sphi 0, %s66
      %s83 = sphi 0, %s67
      %s87 = sphi 0, %s87
      %s89 = sphi 0, %s87
      %s90 = sphi 0, %s89
      %s104 = sphi 0, %s90
      %s110 = sphi 0, %s112
      %s113 = sphi 0, %s110
      %s114 = sphi 0, %s113
      %s130 = sphi 0, %s114
    $region4: #{ensemble_forward.1} parent=1 // loop_header_branch
      %16 = sbr.rel (%p14) target = $region8
    $region5: #{ensemble_forward.1} parent=1 // loop_body
      %s18 = ssub.s32 %s13, 1
      %s19 = ssub.s32 %s13, 2
      %s26 = sadd.s32 1, %s21
      %p27 = scmp.ge.s32.totalorder %s26, 2
      %s28 = scalar_select %p27, 0, %s26
      %s29 = sadd.s32 1, %s20
      %s30 = scalar_select %p27, %s29, %s20
      %p31 = scmp.ge.s32.totalorder %s30, 1
      %s32 = scalar_select %p31, 0, %s30
      %s33 = ssub.s32 %s20, %s32
      %s34 = ssub.s32 %s21, %s28
      %s35 = sor.u32 %s33, %s34
      %p36 = scmp.eq.s32.totalorder %s35, 0
      %s38 = sadd.s32 %s37, 1
      %s39 = scalar_select %p36, %s37, %s38
      %p42 = pneg %p36
      %p43 = scmp.eq.s32.totalorder %s13, 1
      %p44 = por %p42, %p43
      %p45 = scmp.ne.s32.totalorder %s37, %s40
      %p46 = scmp.eq.s32.totalorder %s13, 0
      %p47 = por %p45, %p46
      %p48 = scmp.ne.s32.totalorder %s37, %s40
      %p49 = scmp.eq.s32.totalorder %s18, 1
      %p50 = por %p48, %p49
      %p51 = scmp.ne.s32.totalorder %s40, %s41
      %p52 = scmp.eq.s32.totalorder %s18, 0
      %p53 = por %p51, %p52
      %p54 = scmp.ne.s32.totalorder %s40, %s41
      %p55 = scmp.eq.s32.totalorder %s19, 1
      %p56 = por %p54, %p55
      %p58 = scmp.ne.s32.totalorder %s41, %s57
      %p59 = scmp.eq.s32.totalorder %s19, 0
      %p60 = por %p58, %p59
      %s61 = ssub.s32 %s21, %s28
      %p62 = scmp.eq.s32.totalorder %s61, 0
      %s64 = sadd.s32 %s63, 1
      %s65 = scalar_select %p62, %s63, %s64
      %p68 = pneg %p62
      %p69 = scmp.eq.s32.totalorder %s13, 1
      %p70 = por %p68, %p69
      %p71 = scmp.ne.s32.totalorder %s63, %s66
      %p72 = scmp.eq.s32.totalorder %s13, 0
      %p73 = por %p71, %p72
      %p74 = scmp.ne.s32.totalorder %s63, %s66
      %p75 = scmp.eq.s32.totalorder %s18, 1
      %p76 = por %p74, %p75
      %p77 = scmp.ne.s32.totalorder %s66, %s67
      %p78 = scmp.eq.s32.totalorder %s18, 0
      %p79 = por %p77, %p78
      %p80 = scmp.ne.s32.totalorder %s66, %s67
      %p81 = scmp.eq.s32.totalorder %s19, 1
      %p82 = por %p80, %p81
      %p84 = scmp.ne.s32.totalorder %s67, %s83
      %p85 = scmp.eq.s32.totalorder %s19, 0
      %p86 = por %p84, %p85
      %s88 = sadd.s32 %s87, 1
      %p91 = scmp.eq.s32.totalorder %s13, 1
      %p92 = scmp.ne.s32.totalorder %s87, %s89
      %p93 = scmp.eq.s32.totalorder %s13, 0
      %p94 = por %p92, %p93
      %p95 = scmp.ne.s32.totalorder %s87, %s89
      %p96 = scmp.eq.s32.totalorder %s18, 1
      %p97 = por %p95, %p96
      %p98 = scmp.ne.s32.totalorder %s89, %s90
      %p99 = scmp.eq.s32.totalorder %s18, 0
      %p100 = por %p98, %p99
      %p101 = scmp.ne.s32.totalorder %s89, %s90
      %p102 = scmp.eq.s32.totalorder %s19, 1
      %p103 = por %p101, %p102
      %p105 = scmp.ne.s32.totalorder %s90, %s104
      %p106 = scmp.eq.s32.totalorder %s19, 0
      %p107 = por %p105, %p106
      %s108 = ssub.s32 %s20, %s32
      %p109 = scmp.eq.s32.totalorder %s108, 0
      %s111 = sadd.s32 %s110, 1
      %s112 = scalar_select %p109, %s110, %s111
      %p115 = pneg %p109
      %p116 = scmp.eq.s32.totalorder %s13, 1
      %p117 = por %p115, %p116
      %p118 = scmp.ne.s32.totalorder %s110, %s113
      %p119 = scmp.eq.s32.totalorder %s13, 0
      %p120 = por %p118, %p119
      %p121 = scmp.ne.s32.totalorder %s110, %s113
      %p122 = scmp.eq.s32.totalorder %s18, 1
      %p123 = por %p121, %p122
      %p124 = scmp.ne.s32.totalorder %s113, %s114
      %p125 = scmp.eq.s32.totalorder %s18, 0
      %p126 = por %p124, %p125
      %p127 = scmp.ne.s32.totalorder %s113, %s114
      %p128 = scmp.eq.s32.totalorder %s19, 1
      %p129 = por %p127, %p128
      %p131 = scmp.ne.s32.totalorder %s114, %s130
      %p132 = scmp.eq.s32.totalorder %s19, 0
      %p133 = por %p131, %p132
      %p134 = scmp.le.s32.totalorder 1, %s13
      %p135 = scmp.lt.s32.totalorder %s13, 3
      %p136 = pnand %p134, %p135
      %p137 = pneg %p136
      // Predicated region
      $region9: #{ensemble_forward.1} parent=5 // pred_check
        _
      $region10: #{ensemble_forward.1} parent=5 // pred_check_branch
        %139 = sbr.rel (%p136) target = $region12
      $region11: #{ensemble_forward.1} parent=5 // pred_region
        %s140 = ssub.s32 %s13, 1
        // Predicated region
        $region13: #{ensemble_forward.1} parent=11 // pred_check
          %p141 = pneg %p100
        $region14: #{ensemble_forward.1} parent=11 // pred_check_branch
          %143 = sbr.rel (%p141) target = $region16
        $region15: #{ensemble_forward.1} parent=11 // pred_region
          _
        $region16: #{ensemble_forward.1} parent=11 // pred_fallthru
          _
      $region12: #{ensemble_forward.1} parent=5 // pred_fallthru
        _
      %p144 = scmp.lt.s32.totalorder %s13, 2
      // Predicated region
      $region17: #{ensemble_forward.1} parent=5 // pred_check
        %p145 = pneg %p144
      $region18: #{ensemble_forward.1} parent=5 // pred_check_branch
        %147 = sbr.rel (%p145) target = $region20
      $region19: #{ensemble_forward.1} parent=5 // pred_region
        // Predicated region
        $region21: #{ensemble_forward.1} parent=19 // pred_check
          %p148 = pneg %p47
        $region22: #{ensemble_forward.1} parent=19 // pred_check_branch
          %150 = sbr.rel (%p148) target = $region24
        $region23: #{ensemble_forward.1} parent=19 // pred_region
          %s151 = smul.u32 4, %s21
          %p152 = scmp.lt.s32.totalorder %s20, 0
          %s153 = scalar_select %p152, %s20, 0
          %p154 = scmp.lt.s32.totalorder %s151, 7
          %s155 = scalar_select %p154, %s151, 7
          %s156 = smul.addr %s153, 8
          %s157 = sadd.s32 %s155, %s156
          %s158 = smul.addr %s157, 2
          %s159 = scalar_lea.vmem %s0, %s158
          %s160 = smul.u32 4, %s21
        $region24: #{ensemble_forward.1} parent=19 // pred_fallthru
          _
        // Predicated region
        $region25: #{ensemble_forward.1} parent=19 // pred_check
          %p161 = pneg %p73
        $region26: #{ensemble_forward.1} parent=19 // pred_check_branch
          %163 = sbr.rel (%p161) target = $region28
        $region27: #{ensemble_forward.1} parent=19 // pred_region
          %s164 = sand.u32 %s63, 1
          %s165 = scalar_lea.sflag [#allocation4], %s164
          %s166 = sand.u32 %s63, 1
          %s167 = smul.addr %s166, 768
          %s168 = scalar_lea.vmem [#allocation3], %s167
          %s169 = smul.u32 64, %s21
          %s171 = ssub.s32 12288, 12288
          %172 = vsyncadd %s165, %s171
          %s173 = smul.addr %s169, 3
          %s174 = smul.addr %s173, 64
          %s175 = scalar_lea.hbm %s1, %s174
          %s176 = sshll.u32 %s168, 4
          %s177 = int_to_ptr.vmem [resolvable:$true] %s176
          %182 = dma.hbm_to_vmem [thread:$0]  %s175, 12288, %s177, %s165, 192, 192, 12
        $region28: #{ensemble_forward.1} parent=19 // pred_fallthru
          _
      $region20: #{ensemble_forward.1} parent=5 // pred_fallthru
        _
      %p183 = scmp.le.s32.totalorder 1, %s13
      %p184 = scmp.lt.s32.totalorder %s13, 3
      %p185 = pnand %p183, %p184
      %p186 = pneg %p185
      // Predicated region
      $region29: #{ensemble_forward.1} parent=5 // pred_check
        _
      $region30: #{ensemble_forward.1} parent=5 // pred_check_branch
        %188 = sbr.rel (%p185) target = $region32
      $region31: #{ensemble_forward.1} parent=5 // pred_region
        %s189 = ssub.s32 %s13, 1
        %s190 = sand.u32 %s66, 1
        %s191 = scalar_lea.sflag [#allocation4], %s190
        %s192 = sand.u32 %s66, 1
        %s193 = smul.addr %s192, 768
        %s194 = scalar_lea.vmem [#allocation3], %s193
        // Predicated region
        $region33: #{ensemble_forward.1} parent=31 // pred_check
          %p195 = pneg %p79
        $region34: #{ensemble_forward.1} parent=31 // pred_check_branch
          %197 = sbr.rel (%p195) target = $region36
        $region35: #{ensemble_forward.1} parent=31 // pred_region
          %198 = dma.done %s191, 12288
        $region36: #{ensemble_forward.1} parent=31 // pred_fallthru
          _
        %s199 = smul.u32 4, %s23
        %p200 = scmp.lt.s32.totalorder %s22, 0
        %s201 = scalar_select %p200, %s22, 0
        %p202 = scmp.lt.s32.totalorder %s199, 7
        %s203 = scalar_select %p202, %s199, 7
        %s204 = smul.addr %s201, 8
        %s205 = sadd.s32 %s203, %s204
        %s206 = smul.addr %s205, 2
        %s207 = scalar_lea.vmem %s0, %s206
        %p208 = pneg %p53
        %p209 = pneg %p50
        %s210 = sand.u32 %s66, 1
        %s211 = scalar_lea.sflag [#allocation4], %s210
        %s212 = sand.u32 %s66, 1
        %s213 = smul.addr %s212, 768
        %s214 = scalar_lea.vmem [#allocation3], %s213
        %p215 = pneg %p79
        %p216 = pneg %p76
        %p217 = pneg %p100
        %p218 = pneg %p97
        %p219 = pneg %p126
        %p220 = pneg %p123
        %s221 = smul.u32 4, %s23
        %p222 = scmp.lt.s32.totalorder %s22, 0
        %s223 = scalar_select %p222, %s22, 0
        %p224 = scmp.lt.s32.totalorder %s221, 7
        %s225 = scalar_select %p224, %s221, 7
        %s226 = smul.addr %s223, 8
        %s227 = sadd.s32 %s225, %s226
        %s228 = smul.addr %s227, 2
        %s229 = scalar_lea.vmem %s0, %s228
        %s230 = smul.u32 4, %s23
        %s231 = smul.u32 64, %s23
        %p233 = scmp.eq.s32.totalorder %s23, 0
        // Predicated region
        $region37: #{ensemble_forward.1} parent=31 // pred_check
          %p234 = pneg %p233
        $region38: #{ensemble_forward.1} parent=31 // pred_check_branch
          %236 = sbr.rel (%p234) target = $region40
        $region39: #{ensemble_forward.1} parent=31 // pred_region
          %237 = vst [vmem:[#allocation2] sm:$0x3f] 0.0
        $region40: #{ensemble_forward.1} parent=31 // pred_fallthru
          _
        %v238 = vld [vmem:[#allocation2] sm:$0x3f]
        %v239 = vld [vmem:[%s229] sm:$0xff]
        %v241 = vcombine.high %v239, %v239
        %v243 = vunpack.c.l.s4 1983009808
        %v244 = vunpack.c.0.s8 %v243
        %v245 = vlaneseq
        %v246 = vshrl.u32 %v245, 7
        %v247 = vsub.s32 %v244, %v246
        %v248 = vrot.slane %v239, %v247
        %v250 = vunpack.c.l.s4 1983009808
        %v251 = vunpack.c.0.s8 %v250
        %v252 = vlaneseq
        %v253 = vshrl.u32 %v252, 7
        %v254 = vsub.s32 %v251, %v253
        %v255 = vrot.slane %v241, %v254
        %v256 = vcombine.high %v248, %v248
        %v257 = vcombine.high %v255, %v255
        %v262 = vpack.c.bf16 %v248, %v248
        %v263 = vpack.c.bf16 %v256, %v256
        %v264 = vpack.c.bf16 %v255, %v255
        %v265 = vpack.c.bf16 %v257, %v257
        %v266 = vld [vmem:[%s194] sm:$0xff]
        %v267 = vld [vmem:[%s194 + $0x8] sm:$0xf]
        %v268 = vld [vmem:[%s194 + $0xc] sm:$0xff]
        %v269 = vld [vmem:[%s194 + $0x14] sm:$0xf]
        %v270 = vld [vmem:[%s194 + $0x18] sm:$0xff]
        %v271 = vld [vmem:[%s194 + $0x20] sm:$0xf]
        %v272 = vld [vmem:[%s194 + $0x24] sm:$0xff]
        %v273 = vld [vmem:[%s194 + $0x2c] sm:$0xf]
        %v274 = vld [vmem:[%s194 + $0x30] sm:$0xff]
        %v275 = vld [vmem:[%s194 + $0x38] sm:$0xf]
        %v276 = vld [vmem:[%s194 + $0x3c] sm:$0xff]
        %v277 = vld [vmem:[%s194 + $0x44] sm:$0xf]
        %v278 = vld [vmem:[%s194 + $0x48] sm:$0xff]
        %v279 = vld [vmem:[%s194 + $0x50] sm:$0xf]
        %v280 = vld [vmem:[%s194 + $0x54] sm:$0xff]
        %v281 = vld [vmem:[%s194 + $0x5c] sm:$0xf]
        %v282 = vld [vmem:[%s194 + $0x60] sm:$0xff]
        %v283 = vld [vmem:[%s194 + $0x68] sm:$0xf]
        %v284 = vld [vmem:[%s194 + $0x6c] sm:$0xff]
        %v285 = vld [vmem:[%s194 + $0x74] sm:$0xf]
        %v286 = vld [vmem:[%s194 + $0x78] sm:$0xff]
        %v287 = vld [vmem:[%s194 + $0x80] sm:$0xf]
        %v288 = vld [vmem:[%s194 + $0x84] sm:$0xff]
        %v289 = vld [vmem:[%s194 + $0x8c] sm:$0xf]
        %v290 = vld [vmem:[%s194 + $0x90] sm:$0xff]
        %v291 = vld [vmem:[%s194 + $0x98] sm:$0xf]
        %v292 = vld [vmem:[%s194 + $0x9c] sm:$0xff]
        %v293 = vld [vmem:[%s194 + $0xa4] sm:$0xf]
        %v294 = vld [vmem:[%s194 + $0xa8] sm:$0xff]
        %v295 = vld [vmem:[%s194 + $0xb0] sm:$0xf]
        %v296 = vld [vmem:[%s194 + $0xb4] sm:$0xff]
        %v297 = vld [vmem:[%s194 + $0xbc] sm:$0xf]
        %v298 = vld [vmem:[%s194 + $0xc0] sm:$0xff]
        %v299 = vld [vmem:[%s194 + $0xc8] sm:$0xf]
        %v300 = vld [vmem:[%s194 + $0xcc] sm:$0xff]
        %v301 = vld [vmem:[%s194 + $0xd4] sm:$0xf]
        %v302 = vld [vmem:[%s194 + $0xd8] sm:$0xff]
        %v303 = vld [vmem:[%s194 + $0xe0] sm:$0xf]
        %v304 = vld [vmem:[%s194 + $0xe4] sm:$0xff]
        %v305 = vld [vmem:[%s194 + $0xec] sm:$0xf]
        %v306 = vld [vmem:[%s194 + $0xf0] sm:$0xff]
        %v307 = vld [vmem:[%s194 + $0xf8] sm:$0xf]
        %v308 = vld [vmem:[%s194 + $0xfc] sm:$0xff]
        %v309 = vld [vmem:[%s194 + $0x104] sm:$0xf]
        %v310 = vld [vmem:[%s194 + $0x108] sm:$0xff]
        %v311 = vld [vmem:[%s194 + $0x110] sm:$0xf]
        %v312 = vld [vmem:[%s194 + $0x114] sm:$0xff]
        %v313 = vld [vmem:[%s194 + $0x11c] sm:$0xf]
        %v314 = vld [vmem:[%s194 + $0x120] sm:$0xff]
        %v315 = vld [vmem:[%s194 + $0x128] sm:$0xf]
        %v316 = vld [vmem:[%s194 + $0x12c] sm:$0xff]
        %v317 = vld [vmem:[%s194 + $0x134] sm:$0xf]
        %v318 = vld [vmem:[%s194 + $0x138] sm:$0xff]
        %v319 = vld [vmem:[%s194 + $0x140] sm:$0xf]
        %v320 = vld [vmem:[%s194 + $0x144] sm:$0xff]
        %v321 = vld [vmem:[%s194 + $0x14c] sm:$0xf]
        %v322 = vld [vmem:[%s194 + $0x150] sm:$0xff]
        %v323 = vld [vmem:[%s194 + $0x158] sm:$0xf]
        %v324 = vld [vmem:[%s194 + $0x15c] sm:$0xff]
        %v325 = vld [vmem:[%s194 + $0x164] sm:$0xf]
        %v326 = vld [vmem:[%s194 + $0x168] sm:$0xff]
        %v327 = vld [vmem:[%s194 + $0x170] sm:$0xf]
        %v328 = vld [vmem:[%s194 + $0x174] sm:$0xff]
        %v329 = vld [vmem:[%s194 + $0x17c] sm:$0xf]
        %v330 = vld [vmem:[%s194 + $0x180] sm:$0xff]
        %v331 = vld [vmem:[%s194 + $0x188] sm:$0xf]
        %v332 = vld [vmem:[%s194 + $0x18c] sm:$0xff]
        %v333 = vld [vmem:[%s194 + $0x194] sm:$0xf]
        %v334 = vld [vmem:[%s194 + $0x198] sm:$0xff]
        %v335 = vld [vmem:[%s194 + $0x1a0] sm:$0xf]
        %v336 = vld [vmem:[%s194 + $0x1a4] sm:$0xff]
        %v337 = vld [vmem:[%s194 + $0x1ac] sm:$0xf]
        %v338 = vld [vmem:[%s194 + $0x1b0] sm:$0xff]
        %v339 = vld [vmem:[%s194 + $0x1b8] sm:$0xf]
        %v340 = vld [vmem:[%s194 + $0x1bc] sm:$0xff]
        %v341 = vld [vmem:[%s194 + $0x1c4] sm:$0xf]
        %v342 = vld [vmem:[%s194 + $0x1c8] sm:$0xff]
        %v343 = vld [vmem:[%s194 + $0x1d0] sm:$0xf]
        %v344 = vld [vmem:[%s194 + $0x1d4] sm:$0xff]
        %v345 = vld [vmem:[%s194 + $0x1dc] sm:$0xf]
        %v346 = vld [vmem:[%s194 + $0x1e0] sm:$0xff]
        %v347 = vld [vmem:[%s194 + $0x1e8] sm:$0xf]
        %v348 = vld [vmem:[%s194 + $0x1ec] sm:$0xff]
        %v349 = vld [vmem:[%s194 + $0x1f4] sm:$0xf]
        %v350 = vld [vmem:[%s194 + $0x1f8] sm:$0xff]
        %v351 = vld [vmem:[%s194 + $0x200] sm:$0xf]
        %v352 = vld [vmem:[%s194 + $0x204] sm:$0xff]
        %v353 = vld [vmem:[%s194 + $0x20c] sm:$0xf]
        %v354 = vld [vmem:[%s194 + $0x210] sm:$0xff]
        %v355 = vld [vmem:[%s194 + $0x218] sm:$0xf]
        %v356 = vld [vmem:[%s194 + $0x21c] sm:$0xff]
        %v357 = vld [vmem:[%s194 + $0x224] sm:$0xf]
        %v358 = vld [vmem:[%s194 + $0x228] sm:$0xff]
        %v359 = vld [vmem:[%s194 + $0x230] sm:$0xf]
        %v360 = vld [vmem:[%s194 + $0x234] sm:$0xff]
        %v361 = vld [vmem:[%s194 + $0x23c] sm:$0xf]
        %v362 = vld [vmem:[%s194 + $0x240] sm:$0xff]
        %v363 = vld [vmem:[%s194 + $0x248] sm:$0xf]
        %v364 = vld [vmem:[%s194 + $0x24c] sm:$0xff]
        %v365 = vld [vmem:[%s194 + $0x254] sm:$0xf]
        %v366 = vld [vmem:[%s194 + $0x258] sm:$0xff]
        %v367 = vld [vmem:[%s194 + $0x260] sm:$0xf]
        %v368 = vld [vmem:[%s194 + $0x264] sm:$0xff]
        %v369 = vld [vmem:[%s194 + $0x26c] sm:$0xf]
        %v370 = vld [vmem:[%s194 + $0x270] sm:$0xff]
        %v371 = vld [vmem:[%s194 + $0x278] sm:$0xf]
        %v372 = vld [vmem:[%s194 + $0x27c] sm:$0xff]
        %v373 = vld [vmem:[%s194 + $0x284] sm:$0xf]
        %v374 = vld [vmem:[%s194 + $0x288] sm:$0xff]
        %v375 = vld [vmem:[%s194 + $0x290] sm:$0xf]
        %v376 = vld [vmem:[%s194 + $0x294] sm:$0xff]
        %v377 = vld [vmem:[%s194 + $0x29c] sm:$0xf]
        %v378 = vld [vmem:[%s194 + $0x2a0] sm:$0xff]
        %v379 = vld [vmem:[%s194 + $0x2a8] sm:$0xf]
        %v380 = vld [vmem:[%s194 + $0x2ac] sm:$0xff]
        %v381 = vld [vmem:[%s194 + $0x2b4] sm:$0xf]
        %v382 = vld [vmem:[%s194 + $0x2b8] sm:$0xff]
        %v383 = vld [vmem:[%s194 + $0x2c0] sm:$0xf]
        %v384 = vld [vmem:[%s194 + $0x2c4] sm:$0xff]
        %v385 = vld [vmem:[%s194 + $0x2cc] sm:$0xf]
        %v386 = vld [vmem:[%s194 + $0x2d0] sm:$0xff]
        %v387 = vld [vmem:[%s194 + $0x2d8] sm:$0xf]
        %v388 = vld [vmem:[%s194 + $0x2dc] sm:$0xff]
        %v389 = vld [vmem:[%s194 + $0x2e4] sm:$0xf]
        %v390 = vld [vmem:[%s194 + $0x2e8] sm:$0xff]
        %v391 = vld [vmem:[%s194 + $0x2f0] sm:$0xf]
        %v392 = vld [vmem:[%s194 + $0x2f4] sm:$0xff]
        %v393 = vld [vmem:[%s194 + $0x2fc] sm:$0xf]
        %v522 = vunpack.c.l.b16 %v266
        %v523 = vunpack.c.h.b16 %v266
        %v524 = vunpack.c.l.b16 %v267
        %v525 = vunpack.c.l.b16 %v268
        %v526 = vunpack.c.h.b16 %v268
        %v527 = vunpack.c.l.b16 %v269
        %v528 = vunpack.c.l.b16 %v270
        %v529 = vunpack.c.h.b16 %v270
        %v530 = vunpack.c.l.b16 %v271
        %v531 = vunpack.c.l.b16 %v272
        %v532 = vunpack.c.h.b16 %v272
        %v533 = vunpack.c.l.b16 %v273
        %v534 = vunpack.c.l.b16 %v274
        %v535 = vunpack.c.h.b16 %v274
        %v536 = vunpack.c.l.b16 %v275
        %v537 = vunpack.c.l.b16 %v276
        %v538 = vunpack.c.h.b16 %v276
        %v539 = vunpack.c.l.b16 %v277
        %v540 = vunpack.c.l.b16 %v278
        %v541 = vunpack.c.h.b16 %v278
        %v542 = vunpack.c.l.b16 %v279
        %v543 = vunpack.c.l.b16 %v280
        %v544 = vunpack.c.h.b16 %v280
        %v545 = vunpack.c.l.b16 %v281
        %v546 = vunpack.c.l.b16 %v282
        %v547 = vunpack.c.h.b16 %v282
        %v548 = vunpack.c.l.b16 %v283
        %v549 = vunpack.c.l.b16 %v284
        %v550 = vunpack.c.h.b16 %v284
        %v551 = vunpack.c.l.b16 %v285
        %v552 = vunpack.c.l.b16 %v286
        %v553 = vunpack.c.h.b16 %v286
        %v554 = vunpack.c.l.b16 %v287
        %v555 = vunpack.c.l.b16 %v288
        %v556 = vunpack.c.h.b16 %v288
        %v557 = vunpack.c.l.b16 %v289
        %v558 = vunpack.c.l.b16 %v290
        %v559 = vunpack.c.h.b16 %v290
        %v560 = vunpack.c.l.b16 %v291
        %v561 = vunpack.c.l.b16 %v292
        %v562 = vunpack.c.h.b16 %v292
        %v563 = vunpack.c.l.b16 %v293
        %v564 = vunpack.c.l.b16 %v294
        %v565 = vunpack.c.h.b16 %v294
        %v566 = vunpack.c.l.b16 %v295
        %v567 = vunpack.c.l.b16 %v296
        %v568 = vunpack.c.h.b16 %v296
        %v569 = vunpack.c.l.b16 %v297
        %v570 = vunpack.c.l.b16 %v298
        %v571 = vunpack.c.h.b16 %v298
        %v572 = vunpack.c.l.b16 %v299
        %v573 = vunpack.c.l.b16 %v300
        %v574 = vunpack.c.h.b16 %v300
        %v575 = vunpack.c.l.b16 %v301
        %v576 = vunpack.c.l.b16 %v302
        %v577 = vunpack.c.h.b16 %v302
        %v578 = vunpack.c.l.b16 %v303
        %v579 = vunpack.c.l.b16 %v304
        %v580 = vunpack.c.h.b16 %v304
        %v581 = vunpack.c.l.b16 %v305
        %v582 = vunpack.c.l.b16 %v306
        %v583 = vunpack.c.h.b16 %v306
        %v584 = vunpack.c.l.b16 %v307
        %v585 = vunpack.c.l.b16 %v308
        %v586 = vunpack.c.h.b16 %v308
        %v587 = vunpack.c.l.b16 %v309
        %v588 = vunpack.c.l.b16 %v310
        %v589 = vunpack.c.h.b16 %v310
        %v590 = vunpack.c.l.b16 %v311
        %v591 = vunpack.c.l.b16 %v312
        %v592 = vunpack.c.h.b16 %v312
        %v593 = vunpack.c.l.b16 %v313
        %v594 = vunpack.c.l.b16 %v314
        %v595 = vunpack.c.h.b16 %v314
        %v596 = vunpack.c.l.b16 %v315
        %v597 = vunpack.c.l.b16 %v316
        %v598 = vunpack.c.h.b16 %v316
        %v599 = vunpack.c.l.b16 %v317
        %v600 = vunpack.c.l.b16 %v318
        %v601 = vunpack.c.h.b16 %v318
        %v602 = vunpack.c.l.b16 %v319
        %v603 = vunpack.c.l.b16 %v320
        %v604 = vunpack.c.h.b16 %v320
        %v605 = vunpack.c.l.b16 %v321
        %v606 = vunpack.c.l.b16 %v322
        %v607 = vunpack.c.h.b16 %v322
        %v608 = vunpack.c.l.b16 %v323
        %v609 = vunpack.c.l.b16 %v324
        %v610 = vunpack.c.h.b16 %v324
        %v611 = vunpack.c.l.b16 %v325
        %v612 = vunpack.c.l.b16 %v326
        %v613 = vunpack.c.h.b16 %v326
        %v614 = vunpack.c.l.b16 %v327
        %v615 = vunpack.c.l.b16 %v328
        %v616 = vunpack.c.h.b16 %v328
        %v617 = vunpack.c.l.b16 %v329
        %v618 = vunpack.c.l.b16 %v330
        %v619 = vunpack.c.h.b16 %v330
        %v620 = vunpack.c.l.b16 %v331
        %v621 = vunpack.c.l.b16 %v332
        %v622 = vunpack.c.h.b16 %v332
        %v623 = vunpack.c.l.b16 %v333
        %v624 = vunpack.c.l.b16 %v334
        %v625 = vunpack.c.h.b16 %v334
        %v626 = vunpack.c.l.b16 %v335
        %v627 = vunpack.c.l.b16 %v336
        %v628 = vunpack.c.h.b16 %v336
        %v629 = vunpack.c.l.b16 %v337
        %v630 = vunpack.c.l.b16 %v338
        %v631 = vunpack.c.h.b16 %v338
        %v632 = vunpack.c.l.b16 %v339
        %v633 = vunpack.c.l.b16 %v340
        %v634 = vunpack.c.h.b16 %v340
        %v635 = vunpack.c.l.b16 %v341
        %v636 = vunpack.c.l.b16 %v342
        %v637 = vunpack.c.h.b16 %v342
        %v638 = vunpack.c.l.b16 %v343
        %v639 = vunpack.c.l.b16 %v344
        %v640 = vunpack.c.h.b16 %v344
        %v641 = vunpack.c.l.b16 %v345
        %v642 = vunpack.c.l.b16 %v346
        %v643 = vunpack.c.h.b16 %v346
        %v644 = vunpack.c.l.b16 %v347
        %v645 = vunpack.c.l.b16 %v348
        %v646 = vunpack.c.h.b16 %v348
        %v647 = vunpack.c.l.b16 %v349
        %v648 = vunpack.c.l.b16 %v350
        %v649 = vunpack.c.h.b16 %v350
        %v650 = vunpack.c.l.b16 %v351
        %v651 = vunpack.c.l.b16 %v352
        %v652 = vunpack.c.h.b16 %v352
        %v653 = vunpack.c.l.b16 %v353
        %v654 = vunpack.c.l.b16 %v354
        %v655 = vunpack.c.h.b16 %v354
        %v656 = vunpack.c.l.b16 %v355
        %v657 = vunpack.c.l.b16 %v356
        %v658 = vunpack.c.h.b16 %v356
        %v659 = vunpack.c.l.b16 %v357
        %v660 = vunpack.c.l.b16 %v358
        %v661 = vunpack.c.h.b16 %v358
        %v662 = vunpack.c.l.b16 %v359
        %v663 = vunpack.c.l.b16 %v360
        %v664 = vunpack.c.h.b16 %v360
        %v665 = vunpack.c.l.b16 %v361
        %v666 = vunpack.c.l.b16 %v362
        %v667 = vunpack.c.h.b16 %v362
        %v668 = vunpack.c.l.b16 %v363
        %v669 = vunpack.c.l.b16 %v364
        %v670 = vunpack.c.h.b16 %v364
        %v671 = vunpack.c.l.b16 %v365
        %v672 = vunpack.c.l.b16 %v366
        %v673 = vunpack.c.h.b16 %v366
        %v674 = vunpack.c.l.b16 %v367
        %v675 = vunpack.c.l.b16 %v368
        %v676 = vunpack.c.h.b16 %v368
        %v677 = vunpack.c.l.b16 %v369
        %v678 = vunpack.c.l.b16 %v370
        %v679 = vunpack.c.h.b16 %v370
        %v680 = vunpack.c.l.b16 %v371
        %v681 = vunpack.c.l.b16 %v372
        %v682 = vunpack.c.h.b16 %v372
        %v683 = vunpack.c.l.b16 %v373
        %v684 = vunpack.c.l.b16 %v374
        %v685 = vunpack.c.h.b16 %v374
        %v686 = vunpack.c.l.b16 %v375
        %v687 = vunpack.c.l.b16 %v376
        %v688 = vunpack.c.h.b16 %v376
        %v689 = vunpack.c.l.b16 %v377
        %v690 = vunpack.c.l.b16 %v378
        %v691 = vunpack.c.h.b16 %v378
        %v692 = vunpack.c.l.b16 %v379
        %v693 = vunpack.c.l.b16 %v380
        %v694 = vunpack.c.h.b16 %v380
        %v695 = vunpack.c.l.b16 %v381
        %v696 = vunpack.c.l.b16 %v382
        %v697 = vunpack.c.h.b16 %v382
        %v698 = vunpack.c.l.b16 %v383
        %v699 = vunpack.c.l.b16 %v384
        %v700 = vunpack.c.h.b16 %v384
        %v701 = vunpack.c.l.b16 %v385
        %v702 = vunpack.c.l.b16 %v386
        %v703 = vunpack.c.h.b16 %v386
        %v704 = vunpack.c.l.b16 %v387
        %v705 = vunpack.c.l.b16 %v388
        %v706 = vunpack.c.h.b16 %v388
        %v707 = vunpack.c.l.b16 %v389
        %v708 = vunpack.c.l.b16 %v390
        %v709 = vunpack.c.h.b16 %v390
        %v710 = vunpack.c.l.b16 %v391
        %v711 = vunpack.c.l.b16 %v392
        %v712 = vunpack.c.h.b16 %v392
        %v713 = vunpack.c.l.b16 %v393
        %v714 = vpack.c.b16 %v525, %v522
        %v715 = vpack.c.b16 %v526, %v523
        %v716 = vpack.c.b16 %v527, %v524
        %v717 = vpack.c.b16 %v531, %v528
        %v718 = vpack.c.b16 %v532, %v529
        %v719 = vpack.c.b16 %v533, %v530
        %v720 = vpack.c.b16 %v537, %v534
        %v721 = vpack.c.b16 %v538, %v535
        %v722 = vpack.c.b16 %v539, %v536
        %v723 = vpack.c.b16 %v543, %v540
        %v724 = vpack.c.b16 %v544, %v541
        %v725 = vpack.c.b16 %v545, %v542
        %v726 = vpack.c.b16 %v549, %v546
        %v727 = vpack.c.b16 %v550, %v547
        %v728 = vpack.c.b16 %v551, %v548
        %v729 = vpack.c.b16 %v555, %v552
        %v730 = vpack.c.b16 %v556, %v553
        %v731 = vpack.c.b16 %v557, %v554
        %v732 = vpack.c.b16 %v561, %v558
        %v733 = vpack.c.b16 %v562, %v559
        %v734 = vpack.c.b16 %v563, %v560
        %v735 = vpack.c.b16 %v567, %v564
        %v736 = vpack.c.b16 %v568, %v565
        %v737 = vpack.c.b16 %v569, %v566
        %v738 = vpack.c.b16 %v573, %v570
        %v739 = vpack.c.b16 %v574, %v571
        %v740 = vpack.c.b16 %v575, %v572
        %v741 = vpack.c.b16 %v579, %v576
        %v742 = vpack.c.b16 %v580, %v577
        %v743 = vpack.c.b16 %v581, %v578
        %v744 = vpack.c.b16 %v585, %v582
        %v745 = vpack.c.b16 %v586, %v583
        %v746 = vpack.c.b16 %v587, %v584
        %v747 = vpack.c.b16 %v591, %v588
        %v748 = vpack.c.b16 %v592, %v589
        %v749 = vpack.c.b16 %v593, %v590
        %v750 = vpack.c.b16 %v597, %v594
        %v751 = vpack.c.b16 %v598, %v595
        %v752 = vpack.c.b16 %v599, %v596
        %v753 = vpack.c.b16 %v603, %v600
        %v754 = vpack.c.b16 %v604, %v601
        %v755 = vpack.c.b16 %v605, %v602
        %v756 = vpack.c.b16 %v609, %v606
        %v757 = vpack.c.b16 %v610, %v607
        %v758 = vpack.c.b16 %v611, %v608
        %v759 = vpack.c.b16 %v615, %v612
        %v760 = vpack.c.b16 %v616, %v613
        %v761 = vpack.c.b16 %v617, %v614
        %v762 = vpack.c.b16 %v621, %v618
        %v763 = vpack.c.b16 %v622, %v619
        %v764 = vpack.c.b16 %v623, %v620
        %v765 = vpack.c.b16 %v627, %v624
        %v766 = vpack.c.b16 %v628, %v625
        %v767 = vpack.c.b16 %v629, %v626
        %v768 = vpack.c.b16 %v633, %v630
        %v769 = vpack.c.b16 %v634, %v631
        %v770 = vpack.c.b16 %v635, %v632
        %v771 = vpack.c.b16 %v639, %v636
        %v772 = vpack.c.b16 %v640, %v637
        %v773 = vpack.c.b16 %v641, %v638
        %v774 = vpack.c.b16 %v645, %v642
        %v775 = vpack.c.b16 %v646, %v643
        %v776 = vpack.c.b16 %v647, %v644
        %v777 = vpack.c.b16 %v651, %v648
        %v778 = vpack.c.b16 %v652, %v649
        %v779 = vpack.c.b16 %v653, %v650
        %v780 = vpack.c.b16 %v657, %v654
        %v781 = vpack.c.b16 %v658, %v655
        %v782 = vpack.c.b16 %v659, %v656
        %v783 = vpack.c.b16 %v663, %v660
        %v784 = vpack.c.b16 %v664, %v661
        %v785 = vpack.c.b16 %v665, %v662
        %v786 = vpack.c.b16 %v669, %v666
        %v787 = vpack.c.b16 %v670, %v667
        %v788 = vpack.c.b16 %v671, %v668
        %v789 = vpack.c.b16 %v675, %v672
        %v790 = vpack.c.b16 %v676, %v673
        %v791 = vpack.c.b16 %v677, %v674
        %v792 = vpack.c.b16 %v681, %v678
        %v793 = vpack.c.b16 %v682, %v679
        %v794 = vpack.c.b16 %v683, %v680
        %v795 = vpack.c.b16 %v687, %v684
        %v796 = vpack.c.b16 %v688, %v685
        %v797 = vpack.c.b16 %v689, %v686
        %v798 = vpack.c.b16 %v693, %v690
        %v799 = vpack.c.b16 %v694, %v691
        %v800 = vpack.c.b16 %v695, %v692
        %v801 = vpack.c.b16 %v699, %v696
        %v802 = vpack.c.b16 %v700, %v697
        %v803 = vpack.c.b16 %v701, %v698
        %v804 = vpack.c.b16 %v705, %v702
        %v805 = vpack.c.b16 %v706, %v703
        %v806 = vpack.c.b16 %v707, %v704
        %v807 = vpack.c.b16 %v711, %v708
        %v808 = vpack.c.b16 %v712, %v709
        %v809 = vpack.c.b16 %v713, %v710
        %906 = vmatprep.subr.bf16.mxu0 %v715
        %907 = vmatpush1.bf16.msra.mxu0 %v714
        %908 = vmatprep.subr.bf16.mxu0 %v718
        %909 = vmatpush1.bf16.msra.mxu0 %v717
        %910 = vmatprep.subr.bf16.mxu0 %v721
        %911 = vmatpush1.bf16.msra.mxu0 %v720
        %912 = vmatprep.subr.bf16.mxu0 %v724
        %913 = vmatpush1.bf16.msra.mxu0 %v723
        %914 = vmatprep.subr.bf16.mxu0 %v727
        %915 = vmatpush1.bf16.msra.mxu0 %v726
        %916 = vmatprep.subr.bf16.mxu0 %v730
        %917 = vmatpush1.bf16.msra.mxu0 %v729
        %918 = vmatprep.subr.bf16.mxu0 %v733
        %919 = vmatpush1.bf16.msra.mxu0 %v732
        %920 = vmatprep.subr.bf16.mxu0 %v736
        %921 = vmatpush1.bf16.msra.mxu0 %v735
        %922 = vmatprep.subr.bf16.mxu0 %v739
        %923 = vmatpush1.bf16.msra.mxu0 %v738
        %924 = vmatprep.subr.bf16.mxu0 %v742
        %925 = vmatpush1.bf16.msra.mxu0 %v741
        %926 = vmatprep.subr.bf16.mxu0 %v745
        %927 = vmatpush1.bf16.msra.mxu0 %v744
        %928 = vmatprep.subr.bf16.mxu0 %v748
        %929 = vmatpush1.bf16.msra.mxu0 %v747
        %930 = vmatprep.subr.bf16.mxu0 %v751
        %931 = vmatpush1.bf16.msra.mxu0 %v750
        %932 = vmatprep.subr.bf16.mxu0 %v754
        %933 = vmatpush1.bf16.msra.mxu0 %v753
        %934 = vmatprep.subr.bf16.mxu0 %v757
        %935 = vmatpush1.bf16.msra.mxu0 %v756
        %936 = vmatprep.subr.bf16.mxu0 %v760
        %937 = vmatpush1.bf16.msra.mxu0 %v759
        %938 = vmatprep.mubr.bf16.mxu0 %v263
        %939 = vmatmul.mubr.bf16.gmra.mrb[0].mxu0 %v262
        %v940 = vpop.f32.mrb[0].mxu0
        %v941 = vadd.f32 0.0, %v940
        %v942 = vpop.f32.mrb[0].mxu0
        %v943 = vadd.f32 0.0, %v942
        %v944 = vpop.f32.mrb[0].mxu0
        %v945 = vpop.f32.mrb[0].mxu0
        %946 = vdwg.mxu0
        %947 = vmatprep.subr.bf16.mxu0 %v763
        %948 = vmatpush1.bf16.msra.mxu0 %v762
        %949 = vmatprep.subr.bf16.mxu0 %v766
        %950 = vmatpush1.bf16.msra.mxu0 %v765
        %951 = vmatprep.subr.bf16.mxu0 %v769
        %952 = vmatpush1.bf16.msra.mxu0 %v768
        %953 = vmatprep.subr.bf16.mxu0 %v772
        %954 = vmatpush1.bf16.msra.mxu0 %v771
        %955 = vmatprep.subr.bf16.mxu0 %v775
        %956 = vmatpush1.bf16.msra.mxu0 %v774
        %957 = vmatprep.subr.bf16.mxu0 %v778
        %958 = vmatpush1.bf16.msra.mxu0 %v777
        %959 = vmatprep.subr.bf16.mxu0 %v781
        %960 = vmatpush1.bf16.msra.mxu0 %v780
        %961 = vmatprep.subr.bf16.mxu0 %v784
        %962 = vmatpush1.bf16.msra.mxu0 %v783
        %963 = vmatprep.subr.bf16.mxu0 %v787
        %964 = vmatpush1.bf16.msra.mxu0 %v786
        %965 = vmatprep.subr.bf16.mxu0 %v790
        %966 = vmatpush1.bf16.msra.mxu0 %v789
        %967 = vmatprep.subr.bf16.mxu0 %v793
        %968 = vmatpush1.bf16.msra.mxu0 %v792
        %969 = vmatprep.subr.bf16.mxu0 %v796
        %970 = vmatpush1.bf16.msra.mxu0 %v795
        %971 = vmatprep.subr.bf16.mxu0 %v799
        %972 = vmatpush1.bf16.msra.mxu0 %v798
        %973 = vmatprep.subr.bf16.mxu0 %v802
        %974 = vmatpush1.bf16.msra.mxu0 %v801
        %975 = vmatprep.subr.bf16.mxu0 %v805
        %976 = vmatpush1.bf16.msra.mxu0 %v804
        %977 = vmatprep.subr.bf16.mxu0 %v808
        %978 = vmatpush1.bf16.msra.mxu0 %v807
        %979 = vmatprep.mubr.bf16.mxu0 %v265
        %980 = vmatmul.mubr.bf16.gmra.mrb[0].mxu0 %v264
        %v981 = vpop.f32.mrb[0].mxu0
        %v982 = vadd.f32 %v941, %v981
        %v983 = vpop.f32.mrb[0].mxu0
        %v984 = vadd.f32 %v943, %v983
        %v985 = vpop.f32.mrb[0].mxu0
        %v986 = vpop.f32.mrb[0].mxu0
        %987 = vdwg.mxu0
        %988 = vmatprep.subr.bf16.mxu0 0
        %989 = vmatpush1.bf16.msra.mxu0 %v716
        %990 = vmatprep.subr.bf16.mxu0 0
        %991 = vmatpush1.bf16.msra.mxu0 %v719
        %992 = vmatprep.subr.bf16.mxu0 0
        %993 = vmatpush1.bf16.msra.mxu0 %v722
        %994 = vmatprep.subr.bf16.mxu0 0
        %995 = vmatpush1.bf16.msra.mxu0 %v725
        %996 = vmatprep.subr.bf16.mxu0 0
        %997 = vmatpush1.bf16.msra.mxu0 %v728
        %998 = vmatprep.subr.bf16.mxu0 0
        %999 = vmatpush1.bf16.msra.mxu0 %v731
        %1000 = vmatprep.subr.bf16.mxu0 0
        %1001 = vmatpush1.bf16.msra.mxu0 %v734
        %1002 = vmatprep.subr.bf16.mxu0 0
        %1003 = vmatpush1.bf16.msra.mxu0 %v737
        %1004 = vmatprep.subr.bf16.mxu0 0
        %1005 = vmatpush1.bf16.msra.mxu0 %v740
        %1006 = vmatprep.subr.bf16.mxu0 0
        %1007 = vmatpush1.bf16.msra.mxu0 %v743
        %1008 = vmatprep.subr.bf16.mxu0 0
        %1009 = vmatpush1.bf16.msra.mxu0 %v746
        %1010 = vmatprep.subr.bf16.mxu0 0
        %1011 = vmatpush1.bf16.msra.mxu0 %v749
        %1012 = vmatprep.subr.bf16.mxu0 0
        %1013 = vmatpush1.bf16.msra.mxu0 %v752
        %1014 = vmatprep.subr.bf16.mxu0 0
        %1015 = vmatpush1.bf16.msra.mxu0 %v755
        %1016 = vmatprep.subr.bf16.mxu0 0
        %1017 = vmatpush1.bf16.msra.mxu0 %v758
        %1018 = vmatprep.subr.bf16.mxu0 0
        %1019 = vmatpush1.bf16.msra.mxu0 %v761
        %1020 = vmatprep.mubr.bf16.mxu0 %v263
        %1021 = vmatmul.mubr.bf16.gmra.mrb[0].mxu0 %v262
        %v1022 = vpop.f32.mrb[0].mxu0
        %v1023 = vadd.f32 0.0, %v1022
        %v1024 = vpop.f32.mrb[0].mxu0
        %v1025 = vpop.f32.mrb[0].mxu0
        %v1026 = vpop.f32.mrb[0].mxu0
        %1027 = vdwg.mxu0
        %1028 = vmatprep.subr.bf16.mxu0 0
        %1029 = vmatpush1.bf16.msra.mxu0 %v764
        %1030 = vmatprep.subr.bf16.mxu0 0
        %1031 = vmatpush1.bf16.msra.mxu0 %v767
        %1032 = vmatprep.subr.bf16.mxu0 0
        %1033 = vmatpush1.bf16.msra.mxu0 %v770
        %1034 = vmatprep.subr.bf16.mxu0 0
        %1035 = vmatpush1.bf16.msra.mxu0 %v773
        %1036 = vmatprep.subr.bf16.mxu0 0
        %1037 = vmatpush1.bf16.msra.mxu0 %v776
        %1038 = vmatprep.subr.bf16.mxu0 0
        %1039 = vmatpush1.bf16.msra.mxu0 %v779
        %1040 = vmatprep.subr.bf16.mxu0 0
        %1041 = vmatpush1.bf16.msra.mxu0 %v782
        %1042 = vmatprep.subr.bf16.mxu0 0
        %1043 = vmatpush1.bf16.msra.mxu0 %v785
        %1044 = vmatprep.subr.bf16.mxu0 0
        %1045 = vmatpush1.bf16.msra.mxu0 %v788
        %1046 = vmatprep.subr.bf16.mxu0 0
        %1047 = vmatpush1.bf16.msra.mxu0 %v791
        %1048 = vmatprep.subr.bf16.mxu0 0
        %1049 = vmatpush1.bf16.msra.mxu0 %v794
        %1050 = vmatprep.subr.bf16.mxu0 0
        %1051 = vmatpush1.bf16.msra.mxu0 %v797
        %1052 = vmatprep.subr.bf16.mxu0 0
        %1053 = vmatpush1.bf16.msra.mxu0 %v800
        %1054 = vmatprep.subr.bf16.mxu0 0
        %1055 = vmatpush1.bf16.msra.mxu0 %v803
        %1056 = vmatprep.subr.bf16.mxu0 0
        %1057 = vmatpush1.bf16.msra.mxu0 %v806
        %1058 = vmatprep.subr.bf16.mxu0 0
        %1059 = vmatpush1.bf16.msra.mxu0 %v809
        %1060 = vmatprep.mubr.bf16.mxu0 %v265
        %1061 = vmatmul.mubr.bf16.gmra.mrb[0].mxu0 %v264
        %v1062 = vpop.f32.mrb[0].mxu0
        %v1063 = vadd.f32 %v1023, %v1062
        %v1064 = vpop.f32.mrb[0].mxu0
        %v1065 = vpop.f32.mrb[0].mxu0
        %v1066 = vpop.f32.mrb[0].mxu0
        %1067 = vdwg.mxu0
        %v1071 = vcombine.low %v982, %v984
        %v1073 = vunpack.c.l.s4 1983009808
        %v1074 = vunpack.c.0.s8 %v1073
        %v1075 = vlaneseq
        %v1076 = vshrl.u32 %v1075, 7
        %v1077 = vsub.s32 %v1074, %v1076
        %v1078 = vrot.slane %v1071, %v1077
        %v1080 = vunpack.c.l.s4 1983009808
        %v1081 = vunpack.c.0.s8 %v1080
        %v1082 = vlaneseq
        %v1083 = vshrl.u32 %v1082, 7
        %v1084 = vsub.s32 %v1081, %v1083
        %v1085 = vrot.slane %v1063, %v1084
        %v1086 = vcombine.low %v1078, %v1085
        %v1088 = vadd.f32 %v238, %v1086
        %1089 = vst [vmem:[#allocation2] sm:$0x3f] %v1088
        %p1090 = scmp.eq.s32.totalorder %s23, 1
        // Predicated region
        $region41: #{ensemble_forward.1} parent=31 // pred_check
          %p1091 = pneg %p1090
        $region42: #{ensemble_forward.1} parent=31 // pred_check_branch
          %1093 = sbr.rel (%p1091) target = $region44
        $region43: #{ensemble_forward.1} parent=31 // pred_region
          %v1094 = vld [vmem:[#allocation2] sm:$0x3f]
          %v1096 = vrot.slane %v1094, 2
          %v1098 = vadd.f32 %v1094, %v1096
          %v1099 = vrot.slane %v1094, 4
          %v1101 = vadd.f32 %v1098, %v1099
          %v1102 = vld [vmem:[%s2] sm:$0x1]
          %v1104 = vlaneseq
          %v1105 = vshrl.u32 %v1104, 7
          %v1106 = vsub.s32 0, %v1105
          %v1107 = vrot.slane %v1102, %v1106
          %v1109 = vadd.f32 %v1101, %v1107
          %1110 = vst [vmem:[#allocation6] sm:$0x3] %v1109
        $region44: #{ensemble_forward.1} parent=31 // pred_fallthru
          _
        // Predicated region
        $region45: #{ensemble_forward.1} parent=31 // pred_check
          %p1111 = pneg %p123
        $region46: #{ensemble_forward.1} parent=31 // pred_check_branch
          %1113 = sbr.rel (%p1111) target = $region48
        $region47: #{ensemble_forward.1} parent=31 // pred_region
          %s1115 = ssub.s32 32, 32
          %1116 = vsyncadd [#allocation5], %s1115
          %s1117 = smul.addr %s22, 32
          %s1118 = scalar_lea.hbm %s3, %s1117
          %s1120 = sshll.u32 [#allocation6], 4
          %s1121 = int_to_ptr.vmem [resolvable:$true] %s1120
          %1123 = dma.vmem_to_hbm [thread:$0]  %s1121, 32, %s1118, [#allocation5]
        $region48: #{ensemble_forward.1} parent=31 // pred_fallthru
          _
        // Predicated region
        $region49: #{ensemble_forward.1} parent=31 // pred_check
          %p1124 = pneg %p123
        $region50: #{ensemble_forward.1} parent=31 // pred_check_branch
          %1126 = sbr.rel (%p1124) target = $region52
        $region51: #{ensemble_forward.1} parent=31 // pred_region
          %1127 = dma.done [#allocation5], 32
        $region52: #{ensemble_forward.1} parent=31 // pred_fallthru
          _
      $region32: #{ensemble_forward.1} parent=5 // pred_fallthru
        _
      %p1128 = scmp.le.s32.totalorder 2, %s13
      // Predicated region
      $region53: #{ensemble_forward.1} parent=5 // pred_check
        %p1129 = pneg %p1128
      $region54: #{ensemble_forward.1} parent=5 // pred_check_branch
        %1131 = sbr.rel (%p1129) target = $region56
      $region55: #{ensemble_forward.1} parent=5 // pred_region
        %s1132 = ssub.s32 %s13, 2
      $region56: #{ensemble_forward.1} parent=5 // pred_fallthru
        _
    $region6: #{ensemble_forward.1} parent=1 // loop_footer
      %s17 = sadd.s32 1, %s13
    $region7: #{ensemble_forward.1} parent=1 // loop_footer_branch
      %12 = sbr.rel target = $region3
    $region8: #{ensemble_forward.1} parent=1 // loop_exit
      _
    %1133 = vsyncpa [#allocation4], 1
    %s1134 = scalar_lea.sflag [#allocation4], 1
    %1135 = vsyncpa %s1134, 1
    %1136 = vsyncpa [#allocation5], 1
    %s1137 = scalar_lea.sflag [#allocation5], 1
    %1138 = vsyncpa %s1137, 1

</llo_original>
